<compile_context>
chip_gen: v6e
topology: v6e:2x2x1
jax: 0.10.0
libtpu: 0.0.40
codegen_flags: <defaults>
</compile_context>

<pallas_src>
import functools

import jax
import jax.numpy as jnp
from jax.experimental import pallas as pl
from jax.experimental.pallas import tpu as pltpu

INPUT_SIZE = 38
HIDDEN_SIZE = 32
OUTPUT_SIZE = 1


def _round_up(n, m):
    return ((n + m - 1) // m) * m


def bpnn_kernel(x_ref, w1_ref, b1_ref, w2_ref, b2_ref, o_ref):
    """Fused fc1 -> ReLU -> fc2 -> sigmoid for one batch tile."""
    x = x_ref[...]                                          # (TB, F)
    # Layer 1 on the MXU, f32 accumulation.
    h = jnp.dot(x, w1_ref[...], preferred_element_type=jnp.float32)
    h = jnp.maximum(h + b1_ref[...], 0.0)                   # (TB, H)  ReLU (VPU)
    # Layer 2 (H -> 1): broadcast-mul on the VPU + lane reduce on the XLU.
    # Avoids an MXU push/drain for a 1-useful-column matmul on the critical path.
    y = jnp.sum(h * w2_ref[...], axis=-1, keepdims=True) + b2_ref[...]   # (TB, 1)
    o_ref[...] = jax.nn.sigmoid(y).astype(o_ref.dtype)      # sigmoid on EUP


@functools.partial(jax.jit, static_argnames=("batch_tile",))
def bpnn_forward(x, w1, b1, w2, b2, batch_tile=None):
    """x: (B, F); w1: (F, H) [in,out]; b1: (1, H); w2: (O, H) [out,in]; b2: (1, O)."""
    B, F = x.shape
    H = w1.shape[1]
    O = w2.shape[0]

    if batch_tile is None:
        # Large tiles amortize the ~0.35us/step pipeline overhead; keep >=2 grid
        # steps when B allows so both v7x TensorCores get work on the parallel axis.
        target = max(_round_up(pl.cdiv(B, 2), 8), 8)
        batch_tile = min(1024, target)
    batch_tile = max(8, _round_up(batch_tile, 8))

    # Ragged batch handling: pad rows to a tile multiple, slice off afterwards.
    B_pad = _round_up(B, batch_tile)
    if B_pad != B:
        x = jnp.pad(x, ((0, B_pad - B), (0, 0)))

    grid = (B_pad // batch_tile,)
    itemsize = x.dtype.itemsize
    cost = pl.CostEstimate(
        flops=2 * B_pad * F * H + 2 * B_pad * H,
        transcendentals=B_pad,
        bytes_accessed=(B_pad * F + F * H + H + O * H + O + B_pad * O) * itemsize,
    )

    out = pl.pallas_call(
        bpnn_kernel,
        out_shape=jax.ShapeDtypeStruct((B_pad, O), x.dtype),
        grid_spec=pltpu.PrefetchScalarGridSpec(
            num_scalar_prefetch=0,
            grid=grid,
            in_specs=[
                pl.BlockSpec((batch_tile, F), lambda i: (i, 0)),  # x tile (streamed)
                pl.BlockSpec((F, H), lambda i: (0, 0)),           # W1 (resident)
                pl.BlockSpec((1, H), lambda i: (0, 0)),           # b1 (resident)
                pl.BlockSpec((O, H), lambda i: (0, 0)),           # W2 (resident)
                pl.BlockSpec((1, O), lambda i: (0, 0)),           # b2 (resident)
            ],
            out_specs=pl.BlockSpec((batch_tile, O), lambda i: (i, 0)),
        ),
        compiler_params=pltpu.CompilerParams(
            dimension_semantics=("parallel",)),
        cost_estimate=cost,
    )(x, w1, b1, w2, b2)
    return out[:B]


def init_params(key, input_size, hidden_size, output_size):
    """PyTorch-style Linear init: U(-1/sqrt(fan_in), 1/sqrt(fan_in))."""
    k1, k2, k3, k4 = jax.random.split(key, 4)
    bound1 = 1.0 / jnp.sqrt(jnp.float32(input_size))
    bound2 = 1.0 / jnp.sqrt(jnp.float32(hidden_size))
    # fc1 stored pre-transposed [in, out]; fc2 kept PyTorch-native [out, in].
    w1 = jax.random.uniform(k1, (input_size, hidden_size), jnp.float32,
                            -bound1, bound1)
    b1 = jax.random.uniform(k2, (1, hidden_size), jnp.float32, -bound1, bound1)
    w2 = jax.random.uniform(k3, (output_size, hidden_size), jnp.float32,
                            -bound2, bound2)
    b2 = jax.random.uniform(k4, (1, output_size), jnp.float32, -bound2, bound2)
    return w1, b1, w2, b2


def reference_forward(x, w1, b1, w2, b2):
    h = jnp.maximum(x @ w1 + b1, 0.0)
    return jax.nn.sigmoid(h @ w2.T + b2)


if __name__ == "__main__":
    key = jax.random.PRNGKey(0)
    kx, kp = jax.random.split(key)

    # Batch not a multiple of 8 to exercise the ragged/padded path and a 2-step grid.
    batch = 10
    x = jax.random.normal(kx, (batch, INPUT_SIZE), jnp.float32)
    w1, b1, w2, b2 = init_params(kp, INPUT_SIZE, HIDDEN_SIZE, OUTPUT_SIZE)

    out = bpnn_forward(x, w1, b1, w2, b2)
    out = jax.block_until_ready(out)

    ref = reference_forward(x, w1, b1, w2, b2)
    assert out.shape == (batch, OUTPUT_SIZE)
    assert jnp.allclose(out, ref, atol=1e-5, rtol=1e-5), "mismatch vs reference"

    print("KERNEL_OK")
</pallas_src>

<mosaic_0001>
module attributes {stable_mosaic.version = 11 : i64} {
  func.func @bpnn_kernel(%arg0: i32, %arg1: memref<8x38xf32, #tpu.memory_space<vmem>>, %arg2: memref<38x32xf32, #tpu.memory_space<vmem>>, %arg3: memref<1x32xf32, #tpu.memory_space<vmem>>, %arg4: memref<1x32xf32, #tpu.memory_space<vmem>>, %arg5: memref<1x1xf32, #tpu.memory_space<vmem>>, %arg6: memref<8x1xf32, #tpu.memory_space<vmem>>) attributes {dimension_semantics = [#tpu.dimension_semantics<parallel>], iteration_bounds = array<i64: 2>, scalar_prefetch = 0 : i64, scratch_operands = 0 : i64, tpu.core_type = #tpu.core_type<tc>, window_params = [{transform_indices = @transform_0, window_bounds = array<i64: 8, 38>}, {pipeline_mode = #tpu.pipeline_mode<synchronous>, transform_indices = @transform_1, window_bounds = array<i64: 38, 32>}, {pipeline_mode = #tpu.pipeline_mode<synchronous>, transform_indices = @transform_2, window_bounds = array<i64: 1, 32>}, {pipeline_mode = #tpu.pipeline_mode<synchronous>, transform_indices = @transform_3, window_bounds = array<i64: 1, 32>}, {pipeline_mode = #tpu.pipeline_mode<synchronous>, transform_indices = @transform_4, window_bounds = array<i64: 1, 1>}, {transform_indices = @transform_5, window_bounds = array<i64: 8, 1>}]} {
    %c0 = arith.constant 0 : index
    %c0_0 = arith.constant 0 : index
    %0 = vector.load %arg1[%c0, %c0_0] : memref<8x38xf32, #tpu.memory_space<vmem>>, vector<8x38xf32>
    %c0_1 = arith.constant 0 : index
    %c0_2 = arith.constant 0 : index
    %1 = vector.load %arg2[%c0_1, %c0_2] : memref<38x32xf32, #tpu.memory_space<vmem>>, vector<38x32xf32>
    %cst = arith.constant dense<0.000000e+00> : vector<8x32xf32>
    %2 = tpu.matmul %0, %1, %cst {dimension_numbers = #tpu.dot_dimension_numbers<[1], [0], [0], [1], [0, 0, 1, 1], [], []>} : vector<8x38xf32>, vector<38x32xf32>, vector<8x32xf32> -> vector<8x32xf32>
    %c0_3 = arith.constant 0 : index
    %c0_4 = arith.constant 0 : index
    %3 = vector.load %arg3[%c0_3, %c0_4] : memref<1x32xf32, #tpu.memory_space<vmem>>, vector<1x32xf32>
    %4 = vector.broadcast %3 : vector<1x32xf32> to vector<8x32xf32>
    %5 = arith.addf %2, %4 : vector<8x32xf32>
    %cst_5 = arith.constant 0.000000e+00 : f32
    %6 = vector.broadcast %cst_5 : f32 to vector<8x32xf32>
    %7 = arith.maximumf %5, %6 : vector<8x32xf32>
    %c0_6 = arith.constant 0 : index
    %c0_7 = arith.constant 0 : index
    %8 = vector.load %arg4[%c0_6, %c0_7] : memref<1x32xf32, #tpu.memory_space<vmem>>, vector<1x32xf32>
    %9 = vector.broadcast %8 : vector<1x32xf32> to vector<8x32xf32>
    %10 = arith.mulf %7, %9 : vector<8x32xf32>
    %cst_8 = arith.constant dense<0.000000e+00> : vector<8xf32>
    %11 = vector.multi_reduction <add>, %10, %cst_8 [1] : vector<8x32xf32> to vector<8xf32>
    %12 = vector.shape_cast %11 : vector<8xf32> to vector<8x1xf32>
    %c0_9 = arith.constant 0 : index
    %c0_10 = arith.constant 0 : index
    %13 = vector.load %arg5[%c0_9, %c0_10] : memref<1x1xf32, #tpu.memory_space<vmem>>, vector<1x1xf32>
    %14 = vector.broadcast %13 : vector<1x1xf32> to vector<8x1xf32>
    %15 = arith.addf %12, %14 : vector<8x1xf32>
    %16 = arith.negf %15 : vector<8x1xf32>
    %17 = math.exp %16 : vector<8x1xf32>
    %cst_11 = arith.constant 1.000000e+00 : f32
    %18 = vector.broadcast %cst_11 : f32 to vector<8x1xf32>
    %19 = arith.addf %18, %17 : vector<8x1xf32>
    %20 = arith.divf %18, %19 : vector<8x1xf32>
    %c0_12 = arith.constant 0 : index
    %c0_13 = arith.constant 0 : index
    %21 = vector.load %arg6[%c0_12, %c0_13] : memref<8x1xf32, #tpu.memory_space<vmem>>, vector<8x1xf32>
    tpu.vector_store %arg6[%c0_12, %c0_13], %20 {strides = array<i32>} : memref<8x1xf32, #tpu.memory_space<vmem>>, vector<8x1xf32>,
    return
  }
  func.func @transform_0(%arg0: i32) -> (i32, i32) {
    %c0_i32 = arith.constant 0 : i32
    %c0_i32_0 = arith.constant 0 : i32
    return %arg0, %c0_i32 : i32, i32
  }
  func.func @transform_1(%arg0: i32) -> (i32, i32) {
    %c0_i32 = arith.constant 0 : i32
    %c0_i32_0 = arith.constant 0 : i32
    %c0_i32_1 = arith.constant 0 : i32
    return %c0_i32, %c0_i32_0 : i32, i32
  }
  func.func @transform_2(%arg0: i32) -> (i32, i32) {
    %c0_i32 = arith.constant 0 : i32
    %c0_i32_0 = arith.constant 0 : i32
    %c0_i32_1 = arith.constant 0 : i32
    return %c0_i32, %c0_i32_0 : i32, i32
  }
  func.func @transform_3(%arg0: i32) -> (i32, i32) {
    %c0_i32 = arith.constant 0 : i32
    %c0_i32_0 = arith.constant 0 : i32
    %c0_i32_1 = arith.constant 0 : i32
    return %c0_i32, %c0_i32_0 : i32, i32
  }
  func.func @transform_4(%arg0: i32) -> (i32, i32) {
    %c0_i32 = arith.constant 0 : i32
    %c0_i32_0 = arith.constant 0 : i32
    %c0_i32_1 = arith.constant 0 : i32
    return %c0_i32, %c0_i32_0 : i32, i32
  }
  func.func @transform_5(%arg0: i32) -> (i32, i32) {
    %c0_i32 = arith.constant 0 : i32
    %c0_i32_0 = arith.constant 0 : i32
    return %arg0, %c0_i32 : i32, i32
  }
}

</mosaic_0001>

<llo_original>
// kernel: bpnn_forward.1
$region0: #{bpnn_forward.1}
  #allocation0 [shape = 'u32[]', space=smem, size = 0x4, offset = 0x4, fixed_abs, tag = 'smem constant byte address 0x4 - core index']
  #allocation1 [shape = 'u32[144,128]{1,0:T(1,128)}', space=vmem, size = 0x12000, scoped, tag = 'internal scratch']
  #allocation2 [shape = 'f32[1,1]{1,0:T(1,128)S(1)}', space=vmem, size = 0x200, scoped, tag = 'scoped memory for bpnn_forward.1']
  %s0 = inlined_call_operand.vmem [shape: f32[16,38], index: 0, kind: input, shape index: {}]
  %s1 = inlined_call_operand.vmem [shape: f32[38,32], index: 1, kind: input, shape index: {}]
  %s2 = inlined_call_operand.vmem [shape: f32[1,32], index: 2, kind: input, shape index: {}]
  %s3 = inlined_call_operand.vmem [shape: f32[1,32], index: 3, kind: input, shape index: {}]
  %s4 = inlined_call_operand.<no memory space> [shape: f32[1,1], index: 4, kind: input, shape index: {}]
  %s5 = inlined_call_operand.vmem [shape: f32[16,1], index: 5, kind: output, shape index: {}]
  %s6 = sld [smem:[#allocation0]]
  $region53: #{bpnn_forward.1} parent=0
    _
  %s8 = ssub.s32 1, %s6
  %s9 = scalar_select 0, %s8, %s6
  %v10 = vstv %s4
  %11 = vst [vmem:[#allocation2] sm:$0x1] %v10
  loop: start=0, step=1, limit=4
  $region2: #{bpnn_forward.1} parent=0 // loop_pre_header
    _
  $region3: #{bpnn_forward.1} parent=0 // loop_header
    %s13 = sphi 0, %s17
    %p14 = scmp.ge.s32.totalorder %s13, 4
    %s23 = sphi 0, %s25
    %s26 = sphi 0, %s23
    %s27 = sphi 0, %s26
    %s43 = sphi 0, %s27
    %s47 = sphi 0, %s47
    %s49 = sphi 0, %s47
    %s50 = sphi 0, %s49
    %s64 = sphi 0, %s50
    %s68 = sphi 0, %s68
    %s70 = sphi 0, %s68
    %s71 = sphi 0, %s70
    %s85 = sphi 0, %s71
    %s89 = sphi 0, %s89
    %s91 = sphi 0, %s89
    %s92 = sphi 0, %s91
    %s106 = sphi 0, %s92
    %s110 = sphi 0, %s110
    %s112 = sphi 0, %s110
    %s113 = sphi 0, %s112
    %s127 = sphi 0, %s113
    %s133 = sphi 0, %s135
    %s136 = sphi 0, %s133
    %s137 = sphi 0, %s136
    %s153 = sphi 0, %s137
  $region4: #{bpnn_forward.1} parent=0 // loop_header_branch
    %16 = sbr.rel (%p14) target = $region8
  $region5: #{bpnn_forward.1} parent=0 // loop_body
    %s18 = ssub.s32 %s13, 1
    %s19 = ssub.s32 %s13, 2
    %s20 = sadd.s32 %s13, 1
    %s21 = ssub.s32 %s13, %s20
    %p22 = scmp.eq.s32.totalorder %s21, 0
    %s24 = sadd.s32 %s23, 1
    %s25 = scalar_select %p22, %s23, %s24
    %p28 = pneg %p22
    %p29 = scmp.eq.s32.totalorder %s13, 1
    %p30 = por %p28, %p29
    %p31 = scmp.ne.s32.totalorder %s23, %s26
    %p32 = scmp.eq.s32.totalorder %s13, 0
    %p33 = por %p31, %p32
    %p34 = scmp.ne.s32.totalorder %s23, %s26
    %p35 = scmp.eq.s32.totalorder %s18, 1
    %p36 = por %p34, %p35
    %p37 = scmp.ne.s32.totalorder %s26, %s27
    %p38 = scmp.eq.s32.totalorder %s18, 0
    %p39 = por %p37, %p38
    %p40 = scmp.ne.s32.totalorder %s26, %s27
    %p41 = scmp.eq.s32.totalorder %s19, 1
    %p42 = por %p40, %p41
    %p44 = scmp.ne.s32.totalorder %s27, %s43
    %p45 = scmp.eq.s32.totalorder %s19, 0
    %p46 = por %p44, %p45
    %s48 = sadd.s32 %s47, 1
    %p51 = scmp.eq.s32.totalorder %s13, 1
    %p52 = scmp.ne.s32.totalorder %s47, %s49
    %p53 = scmp.eq.s32.totalorder %s13, 0
    %p54 = por %p52, %p53
    %p55 = scmp.ne.s32.totalorder %s47, %s49
    %p56 = scmp.eq.s32.totalorder %s18, 1
    %p57 = por %p55, %p56
    %p58 = scmp.ne.s32.totalorder %s49, %s50
    %p59 = scmp.eq.s32.totalorder %s18, 0
    %p60 = por %p58, %p59
    %p61 = scmp.ne.s32.totalorder %s49, %s50
    %p62 = scmp.eq.s32.totalorder %s19, 1
    %p63 = por %p61, %p62
    %p65 = scmp.ne.s32.totalorder %s50, %s64
    %p66 = scmp.eq.s32.totalorder %s19, 0
    %p67 = por %p65, %p66
    %s69 = sadd.s32 %s68, 1
    %p72 = scmp.eq.s32.totalorder %s13, 1
    %p73 = scmp.ne.s32.totalorder %s68, %s70
    %p74 = scmp.eq.s32.totalorder %s13, 0
    %p75 = por %p73, %p74
    %p76 = scmp.ne.s32.totalorder %s68, %s70
    %p77 = scmp.eq.s32.totalorder %s18, 1
    %p78 = por %p76, %p77
    %p79 = scmp.ne.s32.totalorder %s70, %s71
    %p80 = scmp.eq.s32.totalorder %s18, 0
    %p81 = por %p79, %p80
    %p82 = scmp.ne.s32.totalorder %s70, %s71
    %p83 = scmp.eq.s32.totalorder %s19, 1
    %p84 = por %p82, %p83
    %p86 = scmp.ne.s32.totalorder %s71, %s85
    %p87 = scmp.eq.s32.totalorder %s19, 0
    %p88 = por %p86, %p87
    %s90 = sadd.s32 %s89, 1
    %p93 = scmp.eq.s32.totalorder %s13, 1
    %p94 = scmp.ne.s32.totalorder %s89, %s91
    %p95 = scmp.eq.s32.totalorder %s13, 0
    %p96 = por %p94, %p95
    %p97 = scmp.ne.s32.totalorder %s89, %s91
    %p98 = scmp.eq.s32.totalorder %s18, 1
    %p99 = por %p97, %p98
    %p100 = scmp.ne.s32.totalorder %s91, %s92
    %p101 = scmp.eq.s32.totalorder %s18, 0
    %p102 = por %p100, %p101
    %p103 = scmp.ne.s32.totalorder %s91, %s92
    %p104 = scmp.eq.s32.totalorder %s19, 1
    %p105 = por %p103, %p104
    %p107 = scmp.ne.s32.totalorder %s92, %s106
    %p108 = scmp.eq.s32.totalorder %s19, 0
    %p109 = por %p107, %p108
    %s111 = sadd.s32 %s110, 1
    %p114 = scmp.eq.s32.totalorder %s13, 1
    %p115 = scmp.ne.s32.totalorder %s110, %s112
    %p116 = scmp.eq.s32.totalorder %s13, 0
    %p117 = por %p115, %p116
    %p118 = scmp.ne.s32.totalorder %s110, %s112
    %p119 = scmp.eq.s32.totalorder %s18, 1
    %p120 = por %p118, %p119
    %p121 = scmp.ne.s32.totalorder %s112, %s113
    %p122 = scmp.eq.s32.totalorder %s18, 0
    %p123 = por %p121, %p122
    %p124 = scmp.ne.s32.totalorder %s112, %s113
    %p125 = scmp.eq.s32.totalorder %s19, 1
    %p126 = por %p124, %p125
    %p128 = scmp.ne.s32.totalorder %s113, %s127
    %p129 = scmp.eq.s32.totalorder %s19, 0
    %p130 = por %p128, %p129
    %s131 = ssub.s32 %s13, %s20
    %p132 = scmp.eq.s32.totalorder %s131, 0
    %s134 = sadd.s32 %s133, 1
    %s135 = scalar_select %p132, %s133, %s134
    %p138 = pneg %p132
    %p139 = scmp.eq.s32.totalorder %s13, 1
    %p140 = por %p138, %p139
    %p141 = scmp.ne.s32.totalorder %s133, %s136
    %p142 = scmp.eq.s32.totalorder %s13, 0
    %p143 = por %p141, %p142
    %p144 = scmp.ne.s32.totalorder %s133, %s136
    %p145 = scmp.eq.s32.totalorder %s18, 1
    %p146 = por %p144, %p145
    %p147 = scmp.ne.s32.totalorder %s136, %s137
    %p148 = scmp.eq.s32.totalorder %s18, 0
    %p149 = por %p147, %p148
    %p150 = scmp.ne.s32.totalorder %s136, %s137
    %p151 = scmp.eq.s32.totalorder %s19, 1
    %p152 = por %p150, %p151
    %p154 = scmp.ne.s32.totalorder %s137, %s153
    %p155 = scmp.eq.s32.totalorder %s19, 0
    %p156 = por %p154, %p155
    %p157 = scmp.le.s32.totalorder 1, %s13
    %p158 = scmp.lt.s32.totalorder %s13, 3
    %p159 = pnand %p157, %p158
    %p160 = pneg %p159
    // Predicated region
    $region9: #{bpnn_forward.1} parent=5 // pred_check
      _
    $region10: #{bpnn_forward.1} parent=5 // pred_check_branch
      %162 = sbr.rel (%p159) target = $region12
    $region11: #{bpnn_forward.1} parent=5 // pred_region
      %s163 = ssub.s32 %s13, 1
      // Predicated region
      $region13: #{bpnn_forward.1} parent=11 // pred_check
        %p164 = pneg %p60
      $region14: #{bpnn_forward.1} parent=11 // pred_check_branch
        %166 = sbr.rel (%p164) target = $region16
      $region15: #{bpnn_forward.1} parent=11 // pred_region
        _
      $region16: #{bpnn_forward.1} parent=11 // pred_fallthru
        _
      // Predicated region
      $region17: #{bpnn_forward.1} parent=11 // pred_check
        %p167 = pneg %p81
      $region18: #{bpnn_forward.1} parent=11 // pred_check_branch
        %169 = sbr.rel (%p167) target = $region20
      $region19: #{bpnn_forward.1} parent=11 // pred_region
        _
      $region20: #{bpnn_forward.1} parent=11 // pred_fallthru
        _
      // Predicated region
      $region21: #{bpnn_forward.1} parent=11 // pred_check
        %p170 = pneg %p102
      $region22: #{bpnn_forward.1} parent=11 // pred_check_branch
        %172 = sbr.rel (%p170) target = $region24
      $region23: #{bpnn_forward.1} parent=11 // pred_region
        _
      $region24: #{bpnn_forward.1} parent=11 // pred_fallthru
        _
      // Predicated region
      $region25: #{bpnn_forward.1} parent=11 // pred_check
        %p173 = pneg %p123
      $region26: #{bpnn_forward.1} parent=11 // pred_check_branch
        %175 = sbr.rel (%p173) target = $region28
      $region27: #{bpnn_forward.1} parent=11 // pred_region
        _
      $region28: #{bpnn_forward.1} parent=11 // pred_fallthru
        _
    $region12: #{bpnn_forward.1} parent=5 // pred_fallthru
      _
    %p176 = scmp.lt.s32.totalorder %s13, 2
    // Predicated region
    $region29: #{bpnn_forward.1} parent=5 // pred_check
      %p177 = pneg %p176
    $region30: #{bpnn_forward.1} parent=5 // pred_check_branch
      %179 = sbr.rel (%p177) target = $region32
    $region31: #{bpnn_forward.1} parent=5 // pred_region
      // Predicated region
      $region33: #{bpnn_forward.1} parent=31 // pred_check
        %p180 = pneg %p33
      $region34: #{bpnn_forward.1} parent=31 // pred_check_branch
        %182 = sbr.rel (%p180) target = $region36
      $region35: #{bpnn_forward.1} parent=31 // pred_region
        %p183 = scmp.lt.s32.totalorder %s13, 1
        %s184 = scalar_select %p183, %s13, 1
        %s185 = smul.addr %s184, 8
        %s186 = scalar_lea.vmem %s0, %s185
      $region36: #{bpnn_forward.1} parent=31 // pred_fallthru
        _
    $region32: #{bpnn_forward.1} parent=5 // pred_fallthru
      _
    %p187 = scmp.le.s32.totalorder 1, %s13
    %p188 = scmp.lt.s32.totalorder %s13, 3
    %p189 = pnand %p187, %p188
    %p190 = pneg %p189
    // Predicated region
    $region37: #{bpnn_forward.1} parent=5 // pred_check
      _
    $region38: #{bpnn_forward.1} parent=5 // pred_check_branch
      %192 = sbr.rel (%p189) target = $region40
    $region39: #{bpnn_forward.1} parent=5 // pred_region
      %s193 = ssub.s32 %s13, 1
      %p194 = scmp.lt.s32.totalorder %s18, 1
      %s195 = scalar_select %p194, %s18, 1
      %s196 = smul.addr %s195, 8
      %s197 = scalar_lea.vmem %s0, %s196
      %p198 = pneg %p39
      %p199 = pneg %p36
      %p200 = pneg %p60
      %p201 = pneg %p57
      %p202 = pneg %p81
      %p203 = pneg %p78
      %p204 = pneg %p102
      %p205 = pneg %p99
      %p206 = pneg %p123
      %p207 = pneg %p120
      %p208 = pneg %p149
      %p209 = pneg %p146
      %p210 = scmp.lt.s32.totalorder %s18, 1
      %s211 = scalar_select %p210, %s18, 1
      %s212 = smul.addr %s211, 8
      %s213 = scalar_lea.vmem %s5, %s212
      %p214 = scmp.lt.s32.totalorder %s18, 1
      %s215 = scalar_select %p214, %s18, 1
      %s216 = smul.addr %s215, 8
      %s217 = scalar_lea.vmem %s0, %s216
      %p218 = scmp.lt.s32.totalorder %s18, 1
      %s219 = scalar_select %p218, %s18, 1
      %s220 = smul.addr %s219, 8
      %s221 = scalar_lea.vmem %s5, %s220
      %v222 = vld [vmem:[%s217] sm:$0xff]
      %v223 = vld [vmem:[%s1] sm:$0xff]
      %v224 = vld [vmem:[%s1 + $0x8] sm:$0xff]
      %v225 = vld [vmem:[%s1 + $0x10] sm:$0xff]
      %v226 = vld [vmem:[%s1 + $0x18] sm:$0xff]
      %v227 = vld [vmem:[%s1 + $0x20] sm:$0x3f]
      %v228 = vld [vmem:[%s2] sm:$0x1]
      %v230 = vlaneseq
      %v231 = vshrl.u32 %v230, 7
      %v232 = vsub.s32 0, %v231
      %v233 = vrot.slane %v228, %v232
      %vm235 = vcmask 310272
      %v237 = vsel %vm235, %v222, 0
      %vm239 = vcmask 1045504
      %v241 = vsel %vm239, %v227, 0
      %243 = vmatprep.subr.mxu0 0.0
      %244 = vmatpush1.msra.mxu0 0.0
      %245 = vmatprep.subr.mxu0 0.0
      %246 = vmatpush1.msra.mxu0 0.0
      %247 = vmatprep.subr.mxu0 0.0
      %248 = vmatpush1.msra.mxu0 0.0
      %249 = vmatprep.subr.mxu0 0.0
      %250 = vmatpush1.msra.mxu0 0.0
      %251 = vmatprep.subr.mxu0 0.0
      %252 = vmatpush1.msra.mxu0 0.0
      %253 = vmatprep.subr.mxu0 0.0
      %254 = vmatpush1.msra.mxu0 0.0
      %255 = vmatprep.subr.mxu0 0.0
      %256 = vmatpush1.msra.mxu0 0.0
      %257 = vmatprep.subr.mxu0 0.0
      %258 = vmatpush1.msra.mxu0 0.0
      %259 = vmatprep.subr.mxu0 0.0
      %260 = vmatpush1.msra.mxu0 0.0
      %261 = vmatprep.subr.mxu0 0.0
      %262 = vmatpush1.msra.mxu0 0.0
      %263 = vmatprep.subr.mxu0 0.0
      %264 = vmatpush1.msra.mxu0 0.0
      %265 = vmatprep.subr.mxu0 0.0
      %266 = vmatpush1.msra.mxu0 %v241
      %267 = vmatprep.subr.mxu0 0.0
      %268 = vmatpush1.msra.mxu0 %v226
      %269 = vmatprep.subr.mxu0 0.0
      %270 = vmatpush1.msra.mxu0 %v225
      %271 = vmatprep.subr.mxu0 0.0
      %272 = vmatpush1.msra.mxu0 %v224
      %273 = vmatprep.subr.mxu0 0.0
      %274 = vmatpush1.msra.mxu0 %v223
      %275 = vmatprep.subr.mxu0 0.0
      %276 = vmatpush2.msra.mxu0 0.0
      %277 = vmatprep.subr.mxu0 0.0
      %278 = vmatpush2.msra.mxu0 0.0
      %279 = vmatprep.subr.mxu0 0.0
      %280 = vmatpush2.msra.mxu0 0.0
      %281 = vmatprep.subr.mxu0 0.0
      %282 = vmatpush2.msra.mxu0 0.0
      %283 = vmatprep.subr.mxu0 0.0
      %284 = vmatpush2.msra.mxu0 0.0
      %285 = vmatprep.subr.mxu0 0.0
      %286 = vmatpush2.msra.mxu0 0.0
      %287 = vmatprep.subr.mxu0 0.0
      %288 = vmatpush2.msra.mxu0 0.0
      %289 = vmatprep.subr.mxu0 0.0
      %290 = vmatpush2.msra.mxu0 0.0
      %291 = vmatprep.subr.mxu0 0.0
      %292 = vmatpush2.msra.mxu0 0.0
      %293 = vmatprep.subr.mxu0 0.0
      %294 = vmatpush2.msra.mxu0 0.0
      %295 = vmatprep.subr.mxu0 0.0
      %296 = vmatpush2.msra.mxu0 0.0
      %297 = vmatprep.subr.mxu0 0.0
      %298 = vmatpush2.msra.mxu0 0.0
      %299 = vmatprep.subr.mxu0 0.0
      %300 = vmatpush2.msra.mxu0 0.0
      %301 = vmatprep.subr.mxu0 0.0
      %302 = vmatpush2.msra.mxu0 0.0
      %303 = vmatprep.subr.mxu0 0.0
      %304 = vmatpush2.msra.mxu0 0.0
      %305 = vmatprep.subr.mxu0 0.0
      %306 = vmatpush2.msra.mxu0 0.0
      %307 = vmatprep.mubr.f32.mxu0 0.0
      %308 = vmatmul.mubr.f32.gmra.mxu0 %v237
      %v309 = vpop.f32.mrf.mxu0
      %v310 = vadd.f32 %v233, %v309
      %v311 = vpop.f32.mrf.mxu0
      %312 = vdwg.mxu0
      %v313 = vmax.f32 %v310, 0.0
      %v314 = vld [vmem:[%s3] sm:$0x1]
      %v316 = vlaneseq
      %v317 = vshrl.u32 %v316, 7
      %v318 = vsub.s32 0, %v317
      %v319 = vrot.slane %v314, %v318
      %v321 = vmul.f32 %v313, %v319
      %vm322 = vcmask 261120
      %v323 = vsel %vm322, %v321, 0.0
      %324 = vadd.xlane.f32.xlu0 %v323
      %v325 = vpop.xlane.xlu0 %324
      %v326 = vld [vmem:[#allocation2] sm:$0x1]
      %v328 = vlaneseq
      %v329 = vshrl.u32 %v328, 7
      %v330 = vsub.s32 0, %v329
      %v331 = vrot.slane %v326, %v330
      %v333 = vadd.f32 %v325, %v331
      %v334 = vxor.u32 %v333, 2147483648
      %v335 = vmul.f32 %v334, 1.442695
      %v336 = vpow.pop %v335
      %v337 = vadd.f32 %v336, 1.0
      %v338 = vrcp.pop %v337
      %v339 = vmul.f32 1.0, %v338
      %vm340 = vcmask 7168
      %341 = vst.msk [vmem:[%s221] sm:$0xff] %vm340, %v339
      %p342 = scmp.lt.s32.totalorder %s18, 1
      %s343 = scalar_select %p342, %s18, 1
      %s344 = smul.addr %s343, 8
      %s345 = scalar_lea.vmem %s5, %s344
      // Predicated region
      $region41: #{bpnn_forward.1} parent=39 // pred_check
        %p346 = pneg %p146
      $region42: #{bpnn_forward.1} parent=39 // pred_check_branch
        %348 = sbr.rel (%p346) target = $region44
      $region43: #{bpnn_forward.1} parent=39 // pred_region
        _
      $region44: #{bpnn_forward.1} parent=39 // pred_fallthru
        _
    $region40: #{bpnn_forward.1} parent=5 // pred_fallthru
      _
    %p349 = scmp.le.s32.totalorder 2, %s13
    // Predicated region
    $region45: #{bpnn_forward.1} parent=5 // pred_check
      %p350 = pneg %p349
    $region46: #{bpnn_forward.1} parent=5 // pred_check_branch
      %352 = sbr.rel (%p350) target = $region48
    $region47: #{bpnn_forward.1} parent=5 // pred_region
      %s353 = ssub.s32 %s13, 2
      // Predicated region
      $region49: #{bpnn_forward.1} parent=47 // pred_check
        %p354 = pneg %p152
      $region50: #{bpnn_forward.1} parent=47 // pred_check_branch
        %356 = sbr.rel (%p354) target = $region52
      $region51: #{bpnn_forward.1} parent=47 // pred_region
        %p357 = scmp.lt.s32.totalorder %s19, 1
        %s358 = scalar_select %p357, %s19, 1
        %s359 = smul.addr %s358, 8
        %s360 = scalar_lea.vmem %s5, %s359
      $region52: #{bpnn_forward.1} parent=47 // pred_fallthru
        _
    $region48: #{bpnn_forward.1} parent=5 // pred_fallthru
      _
  $region6: #{bpnn_forward.1} parent=0 // loop_footer
    %s17 = sadd.s32 1, %s13
  $region7: #{bpnn_forward.1} parent=0 // loop_footer_branch
    %12 = sbr.rel target = $region3
  $region8: #{bpnn_forward.1} parent=0 // loop_exit
    _

</llo_original>
